<compile_context>
chip_gen: v7x
topology: tpu7x:2x2x1
jax: 0.10.0
libtpu: 0.0.40
codegen_flags: <defaults>
</compile_context>

<pallas_src>
import jax
import jax.numpy as jnp
from jax.experimental import pallas as pl
from jax.experimental.pallas import tpu as pltpu

IN_FEATURES = 5


def mlp_kernel(x_ref, w1_ref, b1_ref, w2_ref, b2_ref, w3t_ref, b3_ref, o_ref):
    # fc1 + ReLU   (MXU: (tile_b, 5) @ (5, h1); tiny K is masked for free)
    h = jnp.dot(x_ref[...], w1_ref[...], preferred_element_type=jnp.float32)
    h = jnp.maximum(h + b1_ref[...], 0.0)
    # fc2 + ReLU
    h = jnp.dot(h, w2_ref[...], preferred_element_type=jnp.float32)
    h = jnp.maximum(h + b2_ref[...], 0.0)
    # fc3 (single output unit) as a cross-lane reduce: avoids an N=1 MXU pass
    # and keeps the output block at its real (tile_b, 1) width.
    logits = jnp.sum(h * w3t_ref[...], axis=-1, keepdims=True) + b3_ref[...]
    o_ref[...] = jax.nn.sigmoid(logits)


def mlp_forward(x, w1, b1, w2, b2, w3, b3, *, tile_b=4096):
    """x: (B, 5) float32. Weights in (in, out) layout. Returns (B, 1) float32."""
    x = x.astype(jnp.float32)
    B, f_in = x.shape
    h1 = w1.shape[1]
    h2 = w2.shape[1]
    w3t = jnp.transpose(w3)  # (1, h2) — tiny, lets the kernel lane-reduce fc3

    # Batch tile: multiple of 8, large enough to amortize per-grid-step
    # overhead, capped so the grid keeps >= 2 steps when B allows it (so both
    # v7x TensorCores get a share of the "parallel" batch axis).
    half_b = (((B + 1) // 2) + 7) // 8 * 8
    tile_b = max(8, min(tile_b, half_b))
    grid = (pl.cdiv(B, tile_b),)  # partial last block handled by Pallas masking

    const = lambda i: (0, 0)  # weights/biases: same block every step (VMEM-resident)

    out = pl.pallas_call(
        mlp_kernel,
        out_shape=jax.ShapeDtypeStruct((B, 1), jnp.float32),
        grid=grid,
        in_specs=[
            pl.BlockSpec((tile_b, f_in), lambda i: (i, 0)),  # x: pipelined per tile
            pl.BlockSpec((f_in, h1), const),                 # w1
            pl.BlockSpec((1, h1), const),                    # b1
            pl.BlockSpec((h1, h2), const),                   # w2
            pl.BlockSpec((1, h2), const),                    # b2
            pl.BlockSpec((1, h2), const),                    # w3^T
            pl.BlockSpec((1, 1), const),                     # b3
        ],
        out_specs=pl.BlockSpec((tile_b, 1), lambda i: (i, 0)),
        compiler_params=pltpu.CompilerParams(
            dimension_semantics=("parallel",),  # batch axis -> both TCs on v7x
        ),
    )(x, w1, b1, w2, b2, w3t, b3)
    return out


def kaiming_uniform(key, fan_in, shape):
    # PyTorch kaiming_uniform_(mode='fan_in', nonlinearity='relu'):
    # bound = sqrt(2) * sqrt(3 / fan_in) = sqrt(6 / fan_in)
    bound = jnp.sqrt(6.0 / fan_in)
    return jax.random.uniform(key, shape, jnp.float32, -bound, bound)


def linear_bias(key, fan_in, shape):
    # PyTorch default Linear bias init: U(-1/sqrt(fan_in), 1/sqrt(fan_in))
    bound = 1.0 / jnp.sqrt(fan_in)
    return jax.random.uniform(key, shape, jnp.float32, -bound, bound)


def _reference(x, w1, b1, w2, b2, w3, b3):
    h = jnp.maximum(x @ w1 + b1, 0.0)
    h = jnp.maximum(h @ w2 + b2, 0.0)
    return jax.nn.sigmoid(h @ w3 + b3)


if __name__ == "__main__":
    hidden_size1 = 32
    hidden_size2 = 32

    key = jax.random.PRNGKey(0)
    kx, kx2, k1, k2, k3, kb1, kb2, kb3 = jax.random.split(key, 8)

    # Weights in (in, out) layout (transposed vs PyTorch's (out, in)).
    w1 = kaiming_uniform(k1, IN_FEATURES, (IN_FEATURES, hidden_size1))
    b1 = linear_bias(kb1, IN_FEATURES, (1, hidden_size1))
    w2 = kaiming_uniform(k2, hidden_size1, (hidden_size1, hidden_size2))
    b2 = linear_bias(kb2, hidden_size1, (1, hidden_size2))
    w3 = kaiming_uniform(k3, hidden_size2, (hidden_size2, 1))
    b3 = linear_bias(kb3, hidden_size2, (1, 1))

    # Check 1: tiny batch (single grid step).
    x_small = jax.random.normal(kx, (8, IN_FEATURES), jnp.float32)
    out_small = jax.block_until_ready(mlp_forward(x_small, w1, b1, w2, b2, w3, b3))
    ref_small = _reference(x_small, w1, b1, w2, b2, w3, b3)
    assert out_small.shape == (8, 1)
    assert jnp.allclose(out_small, ref_small, atol=1e-5), "mismatch (batch=8)"

    # Check 2: multi-step grid (exercises the pipelined batch axis).
    x_big = jax.random.normal(kx2, (48, IN_FEATURES), jnp.float32)
    out_big = jax.block_until_ready(mlp_forward(x_big, w1, b1, w2, b2, w3, b3))
    ref_big = _reference(x_big, w1, b1, w2, b2, w3, b3)
    assert out_big.shape == (48, 1)
    assert jnp.allclose(out_big, ref_big, atol=1e-5), "mismatch (batch=48)"

    print("KERNEL_OK")
</pallas_src>

<mosaic_0001>
module attributes {stable_mosaic.version = 11 : i64} {
  func.func @mlp_kernel(%arg0: i32, %arg1: memref<8x5xf32, #tpu.memory_space<vmem>>, %arg2: memref<5x32xf32, #tpu.memory_space<vmem>>, %arg3: memref<1x32xf32, #tpu.memory_space<vmem>>, %arg4: memref<32x32xf32, #tpu.memory_space<vmem>>, %arg5: memref<1x32xf32, #tpu.memory_space<vmem>>, %arg6: memref<1x32xf32, #tpu.memory_space<vmem>>, %arg7: memref<1x1xf32, #tpu.memory_space<vmem>>, %arg8: memref<8x1xf32, #tpu.memory_space<vmem>>) attributes {dimension_semantics = [#tpu.dimension_semantics<parallel>], iteration_bounds = array<i64: 1>, scalar_prefetch = 0 : i64, scratch_operands = 0 : i64, tpu.core_type = #tpu.core_type<tc>, window_params = [{transform_indices = @transform_0, window_bounds = array<i64: 8, 5>}, {pipeline_mode = #tpu.pipeline_mode<synchronous>, transform_indices = @transform_1, window_bounds = array<i64: 5, 32>}, {pipeline_mode = #tpu.pipeline_mode<synchronous>, transform_indices = @transform_2, window_bounds = array<i64: 1, 32>}, {pipeline_mode = #tpu.pipeline_mode<synchronous>, transform_indices = @transform_3, window_bounds = array<i64: 32, 32>}, {pipeline_mode = #tpu.pipeline_mode<synchronous>, transform_indices = @transform_4, window_bounds = array<i64: 1, 32>}, {pipeline_mode = #tpu.pipeline_mode<synchronous>, transform_indices = @transform_5, window_bounds = array<i64: 1, 32>}, {pipeline_mode = #tpu.pipeline_mode<synchronous>, transform_indices = @transform_6, window_bounds = array<i64: 1, 1>}, {transform_indices = @transform_7, window_bounds = array<i64: 8, 1>}]} {
    %c0 = arith.constant 0 : index
    %c0_0 = arith.constant 0 : index
    %0 = vector.load %arg1[%c0, %c0_0] : memref<8x5xf32, #tpu.memory_space<vmem>>, vector<8x5xf32>
    %c0_1 = arith.constant 0 : index
    %c0_2 = arith.constant 0 : index
    %1 = vector.load %arg2[%c0_1, %c0_2] : memref<5x32xf32, #tpu.memory_space<vmem>>, vector<5x32xf32>
    %cst = arith.constant dense<0.000000e+00> : vector<8x32xf32>
    %2 = tpu.matmul %0, %1, %cst {dimension_numbers = #tpu.dot_dimension_numbers<[1], [0], [0], [1], [0, 0, 1, 1], [], []>} : vector<8x5xf32>, vector<5x32xf32>, vector<8x32xf32> -> vector<8x32xf32>
    %c0_3 = arith.constant 0 : index
    %c0_4 = arith.constant 0 : index
    %3 = vector.load %arg3[%c0_3, %c0_4] : memref<1x32xf32, #tpu.memory_space<vmem>>, vector<1x32xf32>
    %4 = vector.broadcast %3 : vector<1x32xf32> to vector<8x32xf32>
    %5 = arith.addf %2, %4 : vector<8x32xf32>
    %cst_5 = arith.constant 0.000000e+00 : f32
    %6 = vector.broadcast %cst_5 : f32 to vector<8x32xf32>
    %7 = arith.maximumf %5, %6 : vector<8x32xf32>
    %c0_6 = arith.constant 0 : index
    %c0_7 = arith.constant 0 : index
    %8 = vector.load %arg4[%c0_6, %c0_7] : memref<32x32xf32, #tpu.memory_space<vmem>>, vector<32x32xf32>
    %cst_8 = arith.constant dense<0.000000e+00> : vector<8x32xf32>
    %9 = tpu.matmul %7, %8, %cst_8 {dimension_numbers = #tpu.dot_dimension_numbers<[1], [0], [0], [1], [0, 0, 1, 1], [], []>} : vector<8x32xf32>, vector<32x32xf32>, vector<8x32xf32> -> vector<8x32xf32>
    %c0_9 = arith.constant 0 : index
    %c0_10 = arith.constant 0 : index
    %10 = vector.load %arg5[%c0_9, %c0_10] : memref<1x32xf32, #tpu.memory_space<vmem>>, vector<1x32xf32>
    %11 = vector.broadcast %10 : vector<1x32xf32> to vector<8x32xf32>
    %12 = arith.addf %9, %11 : vector<8x32xf32>
    %cst_11 = arith.constant 0.000000e+00 : f32
    %13 = vector.broadcast %cst_11 : f32 to vector<8x32xf32>
    %14 = arith.maximumf %12, %13 : vector<8x32xf32>
    %c0_12 = arith.constant 0 : index
    %c0_13 = arith.constant 0 : index
    %15 = vector.load %arg6[%c0_12, %c0_13] : memref<1x32xf32, #tpu.memory_space<vmem>>, vector<1x32xf32>
    %16 = vector.broadcast %15 : vector<1x32xf32> to vector<8x32xf32>
    %17 = arith.mulf %14, %16 : vector<8x32xf32>
    %cst_14 = arith.constant dense<0.000000e+00> : vector<8xf32>
    %18 = vector.multi_reduction <add>, %17, %cst_14 [1] : vector<8x32xf32> to vector<8xf32>
    %19 = vector.shape_cast %18 : vector<8xf32> to vector<8x1xf32>
    %c0_15 = arith.constant 0 : index
    %c0_16 = arith.constant 0 : index
    %20 = vector.load %arg7[%c0_15, %c0_16] : memref<1x1xf32, #tpu.memory_space<vmem>>, vector<1x1xf32>
    %21 = vector.broadcast %20 : vector<1x1xf32> to vector<8x1xf32>
    %22 = arith.addf %19, %21 : vector<8x1xf32>
    %23 = arith.negf %22 : vector<8x1xf32>
    %24 = math.exp %23 : vector<8x1xf32>
    %cst_17 = arith.constant 1.000000e+00 : f32
    %25 = vector.broadcast %cst_17 : f32 to vector<8x1xf32>
    %26 = arith.addf %25, %24 : vector<8x1xf32>
    %27 = arith.divf %25, %26 : vector<8x1xf32>
    %c0_18 = arith.constant 0 : index
    %c0_19 = arith.constant 0 : index
    %28 = vector.load %arg8[%c0_18, %c0_19] : memref<8x1xf32, #tpu.memory_space<vmem>>, vector<8x1xf32>
    tpu.vector_store %arg8[%c0_18, %c0_19], %27 {strides = array<i32>} : memref<8x1xf32, #tpu.memory_space<vmem>>, vector<8x1xf32>,
    return
  }
  func.func @transform_0(%arg0: i32) -> (i32, i32) {
    %c0_i32 = arith.constant 0 : i32
    %c0_i32_0 = arith.constant 0 : i32
    return %arg0, %c0_i32 : i32, i32
  }
  func.func @transform_1(%arg0: i32) -> (i32, i32) {
    %c0_i32 = arith.constant 0 : i32
    %c0_i32_0 = arith.constant 0 : i32
    %c0_i32_1 = arith.constant 0 : i32
    return %c0_i32, %c0_i32_0 : i32, i32
  }
  func.func @transform_2(%arg0: i32) -> (i32, i32) {
    %c0_i32 = arith.constant 0 : i32
    %c0_i32_0 = arith.constant 0 : i32
    %c0_i32_1 = arith.constant 0 : i32
    return %c0_i32, %c0_i32_0 : i32, i32
  }
  func.func @transform_3(%arg0: i32) -> (i32, i32) {
    %c0_i32 = arith.constant 0 : i32
    %c0_i32_0 = arith.constant 0 : i32
    %c0_i32_1 = arith.constant 0 : i32
    return %c0_i32, %c0_i32_0 : i32, i32
  }
  func.func @transform_4(%arg0: i32) -> (i32, i32) {
    %c0_i32 = arith.constant 0 : i32
    %c0_i32_0 = arith.constant 0 : i32
    %c0_i32_1 = arith.constant 0 : i32
    return %c0_i32, %c0_i32_0 : i32, i32
  }
  func.func @transform_5(%arg0: i32) -> (i32, i32) {
    %c0_i32 = arith.constant 0 : i32
    %c0_i32_0 = arith.constant 0 : i32
    %c0_i32_1 = arith.constant 0 : i32
    return %c0_i32, %c0_i32_0 : i32, i32
  }
  func.func @transform_6(%arg0: i32) -> (i32, i32) {
    %c0_i32 = arith.constant 0 : i32
    %c0_i32_0 = arith.constant 0 : i32
    %c0_i32_1 = arith.constant 0 : i32
    return %c0_i32, %c0_i32_0 : i32, i32
  }
  func.func @transform_7(%arg0: i32) -> (i32, i32) {
    %c0_i32 = arith.constant 0 : i32
    %c0_i32_0 = arith.constant 0 : i32
    return %arg0, %c0_i32 : i32, i32
  }
}

</mosaic_0001>

<llo_original>
// kernel: tpu_custom_call.1
$region0: #{tpu_custom_call.1}
  #allocation0 [shape = 'u32[]', space=smem, size = 0x4, offset = 0x4, fixed_abs, tag = 'smem constant byte address 0x4 - core index']
  #allocation1 [shape = 'u32[144,128]{1,0:T(1,128)}', space=vmem, size = 0x12000, scoped, tag = 'internal scratch']
  #allocation2 [shape = 'f32[1,1]{1,0:T(1,128)S(1)}', space=vmem, size = 0x200, scoped, tag = 'scoped memory for tpu_custom_call.1']
  %s0 = inlined_call_operand.hbm [shape: f32[8,5], index: 0, kind: input, shape index: {}]
  %s1 = inlined_call_operand.hbm [shape: f32[5,32], index: 1, kind: input, shape index: {}]
  %s2 = inlined_call_operand.vmem [shape: f32[1,32], index: 2, kind: input, shape index: {}]
  %s3 = inlined_call_operand.hbm [shape: f32[32,32], index: 3, kind: input, shape index: {}]
  %s4 = inlined_call_operand.vmem [shape: f32[1,32], index: 4, kind: input, shape index: {}]
  %s5 = inlined_call_operand.vmem [shape: f32[1,32], index: 5, kind: input, shape index: {}]
  %s6 = inlined_call_operand.<no memory space> [shape: f32[1,1], index: 6, kind: input, shape index: {}]
  %s7 = inlined_call_operand.vmem [shape: f32[8,1], index: 7, kind: output, shape index: {}]
  %s8 = sld [smem:[#allocation0]]
  $region50: #{tpu_custom_call.1} parent=0
    _
  %s10 = ssub.s32 1, %s8
  %s11 = scalar_select 0, %s10, %s8
  %v12 = vstv %s6
  %13 = vst [vmem:[#allocation2] sm:$0x1] %v12
  $region1: #{tpu_custom_call.1} parent=0
    #allocation3 [shape = 'u8[4096]{0}', space=vmem, size = 0x1000, scoped, tag = 'input window, operand 0, single buffered']
    #allocation4 [shape = 's32[1]{0}', space=sflag, size = 0x4, scoped, tag = 'scoped memory for tpu_custom_call.1']
    #allocation5 [shape = 'u8[4096]{0}', space=vmem, size = 0x1000, scoped, tag = 'input window, operand 1, single buffered']
    #allocation6 [shape = 's32[1]{0}', space=sflag, size = 0x4, scoped, tag = 'scoped memory for tpu_custom_call.1']
    #allocation7 [shape = 'u8[16384]{0}', space=vmem, size = 0x4000, scoped, tag = 'input window, operand 3, single buffered']
    %14 = vsyncpa [#allocation4], 0
    %15 = vsyncpa [#allocation6], 0
    // Predicated region
    $region2: #{tpu_custom_call.1} parent=1 // pred_check
      _
    $region3: #{tpu_custom_call.1} parent=1 // pred_check_branch
      %17 = sbr.rel (0) target = $region5
    $region4: #{tpu_custom_call.1} parent=1 // pred_region
      %s19 = ssub.s32 128, 128
      %20 = vsyncadd [#allocation4], %s19
      %s22 = sshll.u32 [#allocation3], 4
      %s23 = int_to_ptr.vmem [resolvable:$true] %s22
      %25 = dma.hbm_to_vmem [thread:$0]  %s0, 128, %s23, [#allocation4]
    $region5: #{tpu_custom_call.1} parent=1 // pred_fallthru
      _
    // Predicated region
    $region6: #{tpu_custom_call.1} parent=1 // pred_check
      _
    $region7: #{tpu_custom_call.1} parent=1 // pred_check_branch
      %27 = sbr.rel (0) target = $region9
    $region8: #{tpu_custom_call.1} parent=1 // pred_region
      %s29 = ssub.s32 128, 128
      %30 = vsyncadd [#allocation6], %s29
      %s32 = sshll.u32 [#allocation5], 4
      %s33 = int_to_ptr.vmem [resolvable:$true] %s32
      %35 = dma.hbm_to_vmem [thread:$0]  %s1, 128, %s33, [#allocation6]
    $region9: #{tpu_custom_call.1} parent=1 // pred_fallthru
      _
    // Predicated region
    $region10: #{tpu_custom_call.1} parent=1 // pred_check
      _
    $region11: #{tpu_custom_call.1} parent=1 // pred_check_branch
      %37 = sbr.rel (0) target = $region13
    $region12: #{tpu_custom_call.1} parent=1 // pred_region
      _
    $region13: #{tpu_custom_call.1} parent=1 // pred_fallthru
      _
    // Predicated region
    $region14: #{tpu_custom_call.1} parent=1 // pred_check
      _
    $region15: #{tpu_custom_call.1} parent=1 // pred_check_branch
      %39 = sbr.rel (0) target = $region17
    $region16: #{tpu_custom_call.1} parent=1 // pred_region
      %s41 = ssub.s32 512, 512
      %42 = vsyncadd [#allocation6], %s41
      %s43 = sshll.u32 [#allocation7], 4
      %s44 = int_to_ptr.vmem [resolvable:$true] %s43
      %49 = dma.hbm_to_vmem [thread:$0]  %s3, 512, %s44, [#allocation6], 128, 128, 8
    $region17: #{tpu_custom_call.1} parent=1 // pred_fallthru
      _
    // Predicated region
    $region18: #{tpu_custom_call.1} parent=1 // pred_check
      _
    $region19: #{tpu_custom_call.1} parent=1 // pred_check_branch
      %51 = sbr.rel (0) target = $region21
    $region20: #{tpu_custom_call.1} parent=1 // pred_region
      _
    $region21: #{tpu_custom_call.1} parent=1 // pred_fallthru
      _
    // Predicated region
    $region22: #{tpu_custom_call.1} parent=1 // pred_check
      _
    $region23: #{tpu_custom_call.1} parent=1 // pred_check_branch
      %53 = sbr.rel (0) target = $region25
    $region24: #{tpu_custom_call.1} parent=1 // pred_region
      _
    $region25: #{tpu_custom_call.1} parent=1 // pred_fallthru
      _
    // Predicated region
    $region26: #{tpu_custom_call.1} parent=1 // pred_check
      _
    $region27: #{tpu_custom_call.1} parent=1 // pred_check_branch
      %55 = sbr.rel (0) target = $region29
    $region28: #{tpu_custom_call.1} parent=1 // pred_region
      _
    $region29: #{tpu_custom_call.1} parent=1 // pred_fallthru
      _
    // Predicated region
    $region30: #{tpu_custom_call.1} parent=1 // pred_check
      _
    $region31: #{tpu_custom_call.1} parent=1 // pred_check_branch
      %57 = sbr.rel (0) target = $region33
    $region32: #{tpu_custom_call.1} parent=1 // pred_region
      %58 = dma.done [#allocation4], 128
    $region33: #{tpu_custom_call.1} parent=1 // pred_fallthru
      _
    // Predicated region
    $region34: #{tpu_custom_call.1} parent=1 // pred_check
      _
    $region35: #{tpu_custom_call.1} parent=1 // pred_check_branch
      %60 = sbr.rel (0) target = $region37
    $region36: #{tpu_custom_call.1} parent=1 // pred_region
      %61 = dma.done [#allocation6], 128
    $region37: #{tpu_custom_call.1} parent=1 // pred_fallthru
      _
    // Predicated region
    $region38: #{tpu_custom_call.1} parent=1 // pred_check
      _
    $region39: #{tpu_custom_call.1} parent=1 // pred_check_branch
      %63 = sbr.rel (0) target = $region41
    $region40: #{tpu_custom_call.1} parent=1 // pred_region
      %64 = dma.done [#allocation6], 512
    $region41: #{tpu_custom_call.1} parent=1 // pred_fallthru
      _
    %v65 = vld [vmem:[#allocation3] sm:$0xff]
    %v66 = vld [vmem:[#allocation5] sm:$0x1f]
    %v67 = vld [vmem:[%s2] sm:$0x1]
    %v69 = vlaneseq
    %v70 = vshrl.u32 %v69, 7
    %v71 = vsub.s32 0, %v70
    %v72 = vrot.slane %v67, %v71
    %vm74 = vcmask 39936
    %v76 = vsel %vm74, %v65, 0
    %vm78 = vcmask 1044480
    %v80 = vsel %vm78, %v66, 0
    %82 = vmatprep.subr.mxu0 0.0
    %83 = vmatpush1.msra.mxu0 %v80
    %84 = vmatprep.subr.mxu0 0.0
    %85 = vmatpush1.msra.mxu0 0.0
    %86 = vmatprep.subr.mxu0 0.0
    %87 = vmatpush1.msra.mxu0 0.0
    %88 = vmatprep.subr.mxu0 0.0
    %89 = vmatpush1.msra.mxu0 0.0
    %90 = vmatprep.subr.mxu0 0.0
    %91 = vmatpush1.msra.mxu0 0.0
    %92 = vmatprep.subr.mxu0 0.0
    %93 = vmatpush1.msra.mxu0 0.0
    %94 = vmatprep.subr.mxu0 0.0
    %95 = vmatpush1.msra.mxu0 0.0
    %96 = vmatprep.subr.mxu0 0.0
    %97 = vmatpush1.msra.mxu0 0.0
    %98 = vmatprep.subr.mxu0 0.0
    %99 = vmatpush1.msra.mxu0 0.0
    %100 = vmatprep.subr.mxu0 0.0
    %101 = vmatpush1.msra.mxu0 0.0
    %102 = vmatprep.subr.mxu0 0.0
    %103 = vmatpush1.msra.mxu0 0.0
    %104 = vmatprep.subr.mxu0 0.0
    %105 = vmatpush1.msra.mxu0 0.0
    %106 = vmatprep.subr.mxu0 0.0
    %107 = vmatpush1.msra.mxu0 0.0
    %108 = vmatprep.subr.mxu0 0.0
    %109 = vmatpush1.msra.mxu0 0.0
    %110 = vmatprep.subr.mxu0 0.0
    %111 = vmatpush1.msra.mxu0 0.0
    %112 = vmatprep.subr.mxu0 0.0
    %113 = vmatpush1.msra.mxu0 0.0
    %114 = vmatprep.subr.mxu0 0.0
    %115 = vmatpush1.msra.mxu0 0.0
    %116 = vmatprep.subr.mxu0 0.0
    %117 = vmatpush1.msra.mxu0 0.0
    %118 = vmatprep.subr.mxu0 0.0
    %119 = vmatpush1.msra.mxu0 0.0
    %120 = vmatprep.subr.mxu0 0.0
    %121 = vmatpush1.msra.mxu0 0.0
    %122 = vmatprep.subr.mxu0 0.0
    %123 = vmatpush1.msra.mxu0 0.0
    %124 = vmatprep.subr.mxu0 0.0
    %125 = vmatpush1.msra.mxu0 0.0
    %126 = vmatprep.subr.mxu0 0.0
    %127 = vmatpush1.msra.mxu0 0.0
    %128 = vmatprep.subr.mxu0 0.0
    %129 = vmatpush1.msra.mxu0 0.0
    %130 = vmatprep.subr.mxu0 0.0
    %131 = vmatpush1.msra.mxu0 0.0
    %132 = vmatprep.subr.mxu0 0.0
    %133 = vmatpush1.msra.mxu0 0.0
    %134 = vmatprep.subr.mxu0 0.0
    %135 = vmatpush1.msra.mxu0 0.0
    %136 = vmatprep.subr.mxu0 0.0
    %137 = vmatpush1.msra.mxu0 0.0
    %138 = vmatprep.subr.mxu0 0.0
    %139 = vmatpush1.msra.mxu0 0.0
    %140 = vmatprep.subr.mxu0 0.0
    %141 = vmatpush1.msra.mxu0 0.0
    %142 = vmatprep.subr.mxu0 0.0
    %143 = vmatpush1.msra.mxu0 0.0
    %144 = vmatprep.subr.mxu0 0.0
    %145 = vmatpush1.msra.mxu0 0.0
    %146 = vmatprep.mubr.f32.mxu0 0.0
    %147 = vmatmul.mubr.f32.gmra.mrb[0].mxu0 %v76
    %v148 = vpop.f32.mrb[0].mxu0
    %v149 = vadd.f32 %v72, %v148
    %v150 = vpop.f32.mrb[0].mxu0
    %151 = vdwg.mxu0
    %v152 = vmax.f32 %v149, 0.0
    %v153 = vld [vmem:[#allocation7] sm:$0xff]
    %v154 = vld [vmem:[#allocation7 + $0x8] sm:$0xff]
    %v155 = vld [vmem:[#allocation7 + $0x10] sm:$0xff]
    %v156 = vld [vmem:[#allocation7 + $0x18] sm:$0xff]
    %v157 = vld [vmem:[%s4] sm:$0x1]
    %v159 = vlaneseq
    %v160 = vshrl.u32 %v159, 7
    %v161 = vsub.s32 0, %v160
    %v162 = vrot.slane %v157, %v161
    %vm164 = vcmask 261120
    %v166 = vsel %vm164, %v152, 0
    %168 = vmatprep.subr.mxu0 0.0
    %169 = vmatpush1.msra.mxu0 %v153
    %170 = vmatprep.subr.mxu0 0.0
    %171 = vmatpush1.msra.mxu0 %v154
    %172 = vmatprep.subr.mxu0 0.0
    %173 = vmatpush1.msra.mxu0 %v155
    %174 = vmatprep.subr.mxu0 0.0
    %175 = vmatpush1.msra.mxu0 %v156
    %176 = vmatprep.subr.mxu0 0.0
    %177 = vmatpush1.msra.mxu0 0.0
    %178 = vmatprep.subr.mxu0 0.0
    %179 = vmatpush1.msra.mxu0 0.0
    %180 = vmatprep.subr.mxu0 0.0
    %181 = vmatpush1.msra.mxu0 0.0
    %182 = vmatprep.subr.mxu0 0.0
    %183 = vmatpush1.msra.mxu0 0.0
    %184 = vmatprep.subr.mxu0 0.0
    %185 = vmatpush1.msra.mxu0 0.0
    %186 = vmatprep.subr.mxu0 0.0
    %187 = vmatpush1.msra.mxu0 0.0
    %188 = vmatprep.subr.mxu0 0.0
    %189 = vmatpush1.msra.mxu0 0.0
    %190 = vmatprep.subr.mxu0 0.0
    %191 = vmatpush1.msra.mxu0 0.0
    %192 = vmatprep.subr.mxu0 0.0
    %193 = vmatpush1.msra.mxu0 0.0
    %194 = vmatprep.subr.mxu0 0.0
    %195 = vmatpush1.msra.mxu0 0.0
    %196 = vmatprep.subr.mxu0 0.0
    %197 = vmatpush1.msra.mxu0 0.0
    %198 = vmatprep.subr.mxu0 0.0
    %199 = vmatpush1.msra.mxu0 0.0
    %200 = vmatprep.subr.mxu0 0.0
    %201 = vmatpush1.msra.mxu0 0.0
    %202 = vmatprep.subr.mxu0 0.0
    %203 = vmatpush1.msra.mxu0 0.0
    %204 = vmatprep.subr.mxu0 0.0
    %205 = vmatpush1.msra.mxu0 0.0
    %206 = vmatprep.subr.mxu0 0.0
    %207 = vmatpush1.msra.mxu0 0.0
    %208 = vmatprep.subr.mxu0 0.0
    %209 = vmatpush1.msra.mxu0 0.0
    %210 = vmatprep.subr.mxu0 0.0
    %211 = vmatpush1.msra.mxu0 0.0
    %212 = vmatprep.subr.mxu0 0.0
    %213 = vmatpush1.msra.mxu0 0.0
    %214 = vmatprep.subr.mxu0 0.0
    %215 = vmatpush1.msra.mxu0 0.0
    %216 = vmatprep.subr.mxu0 0.0
    %217 = vmatpush1.msra.mxu0 0.0
    %218 = vmatprep.subr.mxu0 0.0
    %219 = vmatpush1.msra.mxu0 0.0
    %220 = vmatprep.subr.mxu0 0.0
    %221 = vmatpush1.msra.mxu0 0.0
    %222 = vmatprep.subr.mxu0 0.0
    %223 = vmatpush1.msra.mxu0 0.0
    %224 = vmatprep.subr.mxu0 0.0
    %225 = vmatpush1.msra.mxu0 0.0
    %226 = vmatprep.subr.mxu0 0.0
    %227 = vmatpush1.msra.mxu0 0.0
    %228 = vmatprep.subr.mxu0 0.0
    %229 = vmatpush1.msra.mxu0 0.0
    %230 = vmatprep.subr.mxu0 0.0
    %231 = vmatpush1.msra.mxu0 0.0
    %232 = vmatprep.mubr.f32.mxu0 0.0
    %233 = vmatmul.mubr.f32.gmra.mrb[0].mxu0 %v166
    %v234 = vpop.f32.mrb[0].mxu0
    %v235 = vadd.f32 %v162, %v234
    %v236 = vpop.f32.mrb[0].mxu0
    %237 = vdwg.mxu0
    %v238 = vmax.f32 %v235, 0.0
    %v239 = vld [vmem:[%s5] sm:$0x1]
    %v241 = vlaneseq
    %v242 = vshrl.u32 %v241, 7
    %v243 = vsub.s32 0, %v242
    %v244 = vrot.slane %v239, %v243
    %v246 = vmul.f32 %v238, %v244
    %v247 = vsel %vm164, %v246, 0.0
    %248 = vadd.xlane.f32.xlu0 %v247
    %v249 = vpop.xlane.xlu0 %248
    %v250 = vld [vmem:[#allocation2] sm:$0x1]
    %v252 = vlaneseq
    %v253 = vshrl.u32 %v252, 7
    %v254 = vsub.s32 0, %v253
    %v255 = vrot.slane %v250, %v254
    %v257 = vadd.f32 %v249, %v255
    %v258 = vxor.u32 %v257, 2147483648
    %v259 = vmul.f32 %v258, 1.442695
    %v260 = vpow.pop %v259
    %v261 = vadd.f32 %v260, 1.0
    %v262 = vrcp.pop %v261
    %v263 = vmul.f32 1.0, %v262
    %vm264 = vcmask 7168
    %265 = vst.msk [vmem:[%s7] sm:$0xff] %vm264, %v263
    // Predicated region
    $region42: #{tpu_custom_call.1} parent=1 // pred_check
      _
    $region43: #{tpu_custom_call.1} parent=1 // pred_check_branch
      %267 = sbr.rel (0) target = $region45
    $region44: #{tpu_custom_call.1} parent=1 // pred_region
      _
    $region45: #{tpu_custom_call.1} parent=1 // pred_fallthru
      _
    // Predicated region
    $region46: #{tpu_custom_call.1} parent=1 // pred_check
      _
    $region47: #{tpu_custom_call.1} parent=1 // pred_check_branch
      %269 = sbr.rel (0) target = $region49
    $region48: #{tpu_custom_call.1} parent=1 // pred_region
      _
    $region49: #{tpu_custom_call.1} parent=1 // pred_fallthru
      _
    %270 = vsyncpa [#allocation4], 1
    %271 = vsyncpa [#allocation6], 1

</llo_original>
